<compile_context>
chip_gen: v5e
topology: v5e:2x2
jax: 0.10.0
libtpu: 0.0.40
codegen_flags: <defaults>
</compile_context>

<pallas_src>
import functools

import jax
import jax.numpy as jnp
from jax import lax
from jax.experimental import pallas as pl
from jax.experimental.pallas import tpu as pltpu


def _cola_head_kernel(x_ref, w_ref, b_ref, o_ref, acc_ref, *,
                      inv_seq_len, seq_len, seq_block, needs_mask):
    """Grid = (batch_tiles, seq_tiles); the sequence axis is a streamed reduction.

    x_ref:   (bb, ts, H)  sequence-output tile (input dtype: f32 or bf16)
    w_ref:   (L, H)       linear weight (torch nn.Linear layout), VMEM-resident
    b_ref:   (1, L)       linear bias, VMEM-resident
    o_ref:   (bb, L)      output logits tile (written only at the last seq tile)
    acc_ref: (bb, H) f32  running sum over the sequence axis
    """
    s = pl.program_id(1)

    @pl.when(s == 0)
    def _init():
        acc_ref[...] = jnp.zeros_like(acc_ref)

    # Partial sum over this sequence tile. The HBM transfer stays in the input
    # dtype (bf16 halves bytes_accessed); the accumulation is always f32.
    x = x_ref[...].astype(jnp.float32)
    if needs_mask:
        # Last tile may extend past S: zero the out-of-range rows before summing.
        row = lax.broadcasted_iota(jnp.int32, (1, seq_block, 1), 1)
        x = jnp.where(row < (seq_len - s * seq_block), x, 0.0)
    acc_ref[...] += jnp.sum(x, axis=1)

    @pl.when(s == pl.num_programs(1) - 1)
    def _finalize():
        pooled = acc_ref[...] * inv_seq_len          # mean over S, 1/S folded in once
        w = w_ref[...]                               # (L, H), native dtype
        # Always use the MXU: the finalize runs once per batch tile and is hidden
        # under the streaming DMA. Keep the weight in its native dtype (bf16xbf16
        # with f32 accumulate is the native fast path); cast pooled to match.
        logits = lax.dot_general(pooled.astype(w.dtype), w,
                                 (((1,), (1,)), ((), ())),
                                 preferred_element_type=jnp.float32)
        logits = logits + b_ref[...].astype(jnp.float32)
        o_ref[...] = jnp.maximum(logits, 0.0).astype(o_ref.dtype)   # ReLU


def _round_down(x, m):
    return (x // m) * m


def _vmem_limit_bytes():
    """Scoped-VMEM request derived from the physical VMEM of the current chip."""
    try:
        cap = int(pltpu.get_tpu_info().vmem_capacity_bytes)
    except Exception:  # non-TPU trace / interpret mode: assume the tightest chip (v7x)
        cap = 64 * 1024 * 1024
    return max(16 * 1024 * 1024, min(cap * 3 // 4, 48 * 1024 * 1024))


def _pick_batch_block(batch, batch_block):
    """bb must be a multiple of 8 or exactly B (output block (bb, L) legality)."""
    if batch_block is not None:
        assert batch % batch_block == 0, "batch_block must divide B"
        assert batch_block % 8 == 0 or batch_block == batch, \
            "batch_block must be a multiple of 8 or equal to B"
        return batch_block
    # Prefer bb=8: output stores stay unmasked and, for B >= 16, the 'parallel'
    # batch axis gets >= 2 grid steps so both v7x TensorCores stream HBM.
    if batch % 8 == 0 and batch > 8:
        return 8
    return batch


def _pick_seq_block(seq_len, seq_block, bb, hidden, itemsize, sublane, vmem_limit,
                    weight_bytes):
    """Largest sublane-aligned tile fitting the per-buffer budget (tail is masked)."""
    if seq_block is not None:
        assert seq_block <= seq_len
        assert seq_block == seq_len or seq_block % sublane == 0, \
            "seq_block must be sublane-aligned or the full sequence"
        return seq_block
    # Budget: explicit vmem_limit minus resident weight (double-buffered), the f32
    # accumulator and slack, split across the two activation pipeline buffers,
    # capped at 16 MiB per buffer (measured ~85%+ of HBM roofline well before that).
    fixed = 2 * weight_bytes + bb * hidden * 4 + 2 * 1024 * 1024
    budget = max(256 * 1024, min(16 * 1024 * 1024, (vmem_limit - fixed) // 2))
    row_bytes = bb * hidden * itemsize
    if seq_len * row_bytes <= budget:
        return seq_len                      # whole sequence fits: one tile, no mask
    ts = _round_down(budget // row_bytes, sublane)
    if ts <= 0:
        ts = min(seq_len, sublane)          # pathological huge-H case
    return min(ts, seq_len)


def cola_forward(sequence_output, weight, bias, *,
                 batch_block=None, seq_block=None):
    """CoLA head: mean over sequence + Linear + ReLU.

    sequence_output: (B, S, H) f32 or bf16 — encoder output (outputs[0]).
                     Prefer bf16: the kernel is HBM-bandwidth bound and accumulates
                     in f32, so bf16 halves bytes_accessed at no accuracy cost.
    weight:          (L, H)   torch nn.Linear layout (out_features, in_features).
    bias:            (L,)
    Returns (B, L) f32 logits.
    """
    B, S, H = sequence_output.shape
    L, H_w = weight.shape
    assert H_w == H, "weight must be (num_labels, hidden_size)"
    itemsize = jnp.dtype(sequence_output.dtype).itemsize
    # Required sublane multiple for the streamed (ts, H) block face: 8 for f32,
    # 16 for bf16, 32 for int8/fp8 (packed sublanes).
    sublane = 8 * max(1, 4 // itemsize)

    vmem_limit = _vmem_limit_bytes()
    weight_bytes = L * H * jnp.dtype(weight.dtype).itemsize

    bb = _pick_batch_block(B, batch_block)
    ts = _pick_seq_block(S, seq_block, bb, H, itemsize, sublane, vmem_limit,
                         weight_bytes)
    needs_mask = (S % ts) != 0

    grid = (B // bb, pl.cdiv(S, ts))
    bias2d = bias.reshape(1, L)

    kernel = functools.partial(
        _cola_head_kernel,
        inv_seq_len=float(1.0 / S),   # fold the mean's 1/S into the finalize step
        seq_len=S,
        seq_block=ts,
        needs_mask=needs_mask,
    )

    return pl.pallas_call(
        kernel,
        out_shape=jax.ShapeDtypeStruct((B, L), jnp.float32),
        grid_spec=pltpu.PrefetchScalarGridSpec(
            num_scalar_prefetch=0,
            grid=grid,
            in_specs=[
                # Activation: streamed over the sequence axis (double-buffered DMA).
                pl.BlockSpec((bb, ts, H), lambda b, s: (b, s, 0)),
                # Weight / bias: same block every grid step -> fetched once, resident.
                pl.BlockSpec((L, H), lambda b, s: (0, 0)),
                pl.BlockSpec((1, L), lambda b, s: (0, 0)),
            ],
            out_specs=pl.BlockSpec((bb, L), lambda b, s: (b, 0)),
            scratch_shapes=[pltpu.VMEM((bb, H), jnp.float32)],
        ),
        compiler_params=pltpu.CompilerParams(
            # Batch tiles are independent; the sequence axis carries the accumulator.
            dimension_semantics=("parallel", "arbitrary"),
            vmem_limit_bytes=vmem_limit,
        ),
    )(sequence_output, weight, bias2d)


def _reference(sequence_output, weight, bias):
    pooled = jnp.mean(sequence_output.astype(jnp.float32), axis=1)
    return jnp.maximum(pooled @ weight.astype(jnp.float32).T + bias.astype(jnp.float32), 0.0)


if __name__ == "__main__":
    # Small shapes consistent with CoLA.forward: batch=2, seq=16, hidden=32, num_labels=2.
    B, S, H, L = 2, 16, 32, 2

    key = jax.random.PRNGKey(0)
    k_x, k_w, k_b = jax.random.split(key, 3)

    # Stand-in for the pretrained encoder output (outputs[0]).
    sequence_output = jax.random.normal(k_x, (B, S, H), dtype=jnp.float32)
    # eos_fc_layer = FCLayer(hidden_size, num_labels); torch nn.Linear weight layout (L, H).
    weight = jax.random.normal(k_w, (L, H), dtype=jnp.float32) * 0.02
    bias = jax.random.normal(k_b, (L,), dtype=jnp.float32) * 0.02

    # f32 path, explicitly forcing 2 sequence tiles to exercise the accumulator.
    logits = cola_forward(sequence_output, weight, bias, seq_block=8)
    logits = jax.block_until_ready(logits)
    ref = _reference(sequence_output, weight, bias)
    assert logits.shape == (B, L)
    assert jnp.allclose(logits, ref, atol=1e-5, rtol=1e-5), (logits, ref)

    # Masked-tail path: S=12 with ts=8 -> second tile extends past S and is masked.
    S2 = 12
    seq_odd = jax.random.normal(jax.random.PRNGKey(1), (B, S2, H), dtype=jnp.float32)
    logits_odd = jax.block_until_ready(cola_forward(seq_odd, weight, bias, seq_block=8))
    ref_odd = _reference(seq_odd, weight, bias)
    assert jnp.allclose(logits_odd, ref_odd, atol=1e-5, rtol=1e-5), (logits_odd, ref_odd)

    # bf16 activation path (preferred in production: HBM-bandwidth bound kernel):
    # bf16 HBM transfer, f32 accumulation. Auto tile selection (full S block here).
    seq_bf16 = sequence_output.astype(jnp.bfloat16)
    logits_bf16 = jax.block_until_ready(cola_forward(seq_bf16, weight, bias))
    ref_bf16 = _reference(seq_bf16, weight, bias)
    assert jnp.allclose(logits_bf16, ref_bf16, atol=1e-3, rtol=1e-3), (logits_bf16, ref_bf16)

    print("KERNEL_OK")
</pallas_src>

<mosaic_0001>
module attributes {stable_mosaic.version = 11 : i64} {
  func.func @_cola_head_kernel(%arg0: i32, %arg1: i32, %arg2: memref<2x8x32xf32, #tpu.memory_space<vmem>>, %arg3: memref<2x32xf32, #tpu.memory_space<vmem>>, %arg4: memref<1x2xf32, #tpu.memory_space<vmem>>, %arg5: memref<2x2xf32, #tpu.memory_space<vmem>>, %arg6: memref<2x32xf32, #tpu.memory_space<vmem>>) attributes {dimension_semantics = [#tpu.dimension_semantics<parallel>, #tpu.dimension_semantics<arbitrary>], iteration_bounds = array<i64: 1, 2>, scalar_prefetch = 0 : i64, scratch_operands = 1 : i64, tpu.core_type = #tpu.core_type<tc>, window_params = [{transform_indices = @transform_0, window_bounds = array<i64: 2, 8, 32>}, {pipeline_mode = #tpu.pipeline_mode<synchronous>, transform_indices = @transform_1, window_bounds = array<i64: 2, 32>}, {pipeline_mode = #tpu.pipeline_mode<synchronous>, transform_indices = @transform_2, window_bounds = array<i64: 1, 2>}, {transform_indices = @transform_3, window_bounds = array<i64: 2, 2>}]} {
    %c0_i32 = arith.constant 0 : i32
    %0 = arith.cmpi eq, %arg1, %c0_i32 : i32
    %1 = arith.extui %0 : i1 to i32
    %c0_i32_0 = arith.constant 0 : i32
    %2 = arith.cmpi ne, %1, %c0_i32_0 : i32
    scf.if %2 {
      %cst_8 = arith.constant 0.000000e+00 : f32
      %11 = vector.broadcast %cst_8 : f32 to vector<2x32xf32>
      %c0_9 = arith.constant 0 : index
      %c0_10 = arith.constant 0 : index
      %12 = vector.load %arg6[%c0_9, %c0_10] : memref<2x32xf32, #tpu.memory_space<vmem>>, vector<2x32xf32>
      tpu.vector_store %arg6[%c0_9, %c0_10], %11 {strides = array<i32>} : memref<2x32xf32, #tpu.memory_space<vmem>>, vector<2x32xf32>,
    } else {
    }
    %c0 = arith.constant 0 : index
    %c0_1 = arith.constant 0 : index
    %c0_2 = arith.constant 0 : index
    %3 = vector.load %arg2[%c0, %c0_1, %c0_2] : memref<2x8x32xf32, #tpu.memory_space<vmem>>, vector<2x8x32xf32>
    %c0_3 = arith.constant 0 : index
    %c0_4 = arith.constant 0 : index
    %4 = vector.load %arg6[%c0_3, %c0_4] : memref<2x32xf32, #tpu.memory_space<vmem>>, vector<2x32xf32>
    %cst = arith.constant dense<0.000000e+00> : vector<2x32xf32>
    %5 = vector.multi_reduction <add>, %3, %cst [1] : vector<2x8x32xf32> to vector<2x32xf32>
    %6 = arith.addf %4, %5 : vector<2x32xf32>
    %c0_5 = arith.constant 0 : index
    %c0_6 = arith.constant 0 : index
    %7 = vector.load %arg6[%c0_5, %c0_6] : memref<2x32xf32, #tpu.memory_space<vmem>>, vector<2x32xf32>
    tpu.vector_store %arg6[%c0_5, %c0_6], %6 {strides = array<i32>} : memref<2x32xf32, #tpu.memory_space<vmem>>, vector<2x32xf32>,
    %c1_i32 = arith.constant 1 : i32
    %8 = arith.cmpi eq, %arg1, %c1_i32 : i32
    %9 = arith.extui %8 : i1 to i32
    %c0_i32_7 = arith.constant 0 : i32
    %10 = arith.cmpi ne, %9, %c0_i32_7 : i32
    scf.if %10 {
      %c0_8 = arith.constant 0 : index
      %c0_9 = arith.constant 0 : index
      %11 = vector.load %arg6[%c0_8, %c0_9] : memref<2x32xf32, #tpu.memory_space<vmem>>, vector<2x32xf32>
      %cst_10 = arith.constant 6.250000e-02 : f32
      %12 = vector.broadcast %cst_10 : f32 to vector<2x32xf32>
      %13 = arith.mulf %11, %12 : vector<2x32xf32>
      %c0_11 = arith.constant 0 : index
      %c0_12 = arith.constant 0 : index
      %14 = vector.load %arg3[%c0_11, %c0_12] : memref<2x32xf32, #tpu.memory_space<vmem>>, vector<2x32xf32>
      %cst_13 = arith.constant dense<0.000000e+00> : vector<2x2xf32>
      %15 = tpu.matmul %13, %14, %cst_13 {dimension_numbers = #tpu.dot_dimension_numbers<[1], [1], [0], [0], [0, 0, 1, 0], [], []>} : vector<2x32xf32>, vector<2x32xf32>, vector<2x2xf32> -> vector<2x2xf32>
      %c0_14 = arith.constant 0 : index
      %c0_15 = arith.constant 0 : index
      %16 = vector.load %arg4[%c0_14, %c0_15] : memref<1x2xf32, #tpu.memory_space<vmem>>, vector<1x2xf32>
      %17 = vector.broadcast %16 : vector<1x2xf32> to vector<2x2xf32>
      %18 = arith.addf %15, %17 : vector<2x2xf32>
      %cst_16 = arith.constant 0.000000e+00 : f32
      %19 = vector.broadcast %cst_16 : f32 to vector<2x2xf32>
      %20 = arith.maximumf %18, %19 : vector<2x2xf32>
      %c0_17 = arith.constant 0 : index
      %c0_18 = arith.constant 0 : index
      %21 = vector.load %arg5[%c0_17, %c0_18] : memref<2x2xf32, #tpu.memory_space<vmem>>, vector<2x2xf32>
      tpu.vector_store %arg5[%c0_17, %c0_18], %20 {strides = array<i32>} : memref<2x2xf32, #tpu.memory_space<vmem>>, vector<2x2xf32>,
    } else {
    }
    return
  }
  func.func @transform_0(%arg0: i32, %arg1: i32) -> (i32, i32, i32) {
    %c0_i32 = arith.constant 0 : i32
    %c0_i32_0 = arith.constant 0 : i32
    return %arg0, %arg1, %c0_i32 : i32, i32, i32
  }
  func.func @transform_1(%arg0: i32, %arg1: i32) -> (i32, i32) {
    %c0_i32 = arith.constant 0 : i32
    %c0_i32_0 = arith.constant 0 : i32
    %c0_i32_1 = arith.constant 0 : i32
    return %c0_i32, %c0_i32_0 : i32, i32
  }
  func.func @transform_2(%arg0: i32, %arg1: i32) -> (i32, i32) {
    %c0_i32 = arith.constant 0 : i32
    %c0_i32_0 = arith.constant 0 : i32
    %c0_i32_1 = arith.constant 0 : i32
    return %c0_i32, %c0_i32_0 : i32, i32
  }
  func.func @transform_3(%arg0: i32, %arg1: i32) -> (i32, i32) {
    %c0_i32 = arith.constant 0 : i32
    %c0_i32_0 = arith.constant 0 : i32
    return %arg0, %c0_i32 : i32, i32
  }
}

</mosaic_0001>

<llo_original>
// kernel: tpu_custom_call.1
$region0: #{tpu_custom_call.1}
  #allocation0 [shape = 'u32[]', space=smem, size = 0x4, offset = 0x4, fixed_abs, tag = 'smem constant byte address 0x4 - core index']
  #allocation1 [shape = 'u32[72,128]{1,0:T(1,128)}', space=vmem, size = 0x9000, scoped, tag = 'internal scratch']
  #allocation2 [shape = 'f32[2,32]{1,0:T(2,128)}', space=vmem, size = 0x400, scoped, tag = 'scratch operand']
  %s0 = inlined_call_operand.hbm [shape: f32[2,16,32], index: 0, kind: input, shape index: {}]
  %s1 = inlined_call_operand.hbm [shape: f32[2,32], index: 1, kind: input, shape index: {}]
  %s2 = inlined_call_operand.vmem [shape: f32[1,2], index: 2, kind: input, shape index: {}]
  %s3 = inlined_call_operand.hbm [shape: f32[2,2], index: 3, kind: output, shape index: {}]
  %s4 = sld [smem:[#allocation0]]
  $region61: #{tpu_custom_call.1} parent=0
    _
  %s6 = ssub.s32 1, %s4
  %s7 = scalar_select 0, %s6, %s4
  $region1: #{tpu_custom_call.1} parent=0
    #allocation3 [shape = 'u8[16384]{0}', space=vmem, size = 0x4000, scoped, tag = 'input window, operand 0']
    #allocation4 [shape = 's32[2]{0}', space=sflag, size = 0x8, scoped, tag = 'scoped memory for tpu_custom_call.1']
    #allocation5 [shape = 's32[2]{0}', space=sflag, size = 0x8, scoped, tag = 'scoped memory for tpu_custom_call.1']
    #allocation6 [shape = 'u8[1024]{0}', space=vmem, size = 0x400, scoped, tag = 'input window, operand 1, single buffered']
    #allocation7 [shape = 's32[1]{0}', space=sflag, size = 0x4, scoped, tag = 'scoped memory for tpu_custom_call.1']
    #allocation8 [shape = 'u8[1024]{0}', space=vmem, size = 0x400, scoped, tag = 'output window, operand 0, single buffered']
    %8 = vsyncpa [#allocation4], 0
    %s9 = scalar_lea.sflag [#allocation4], 1
    %10 = vsyncpa %s9, 0
    %11 = vsyncpa [#allocation7], 0
    %12 = vsyncpa [#allocation5], 0
    loop: start=0, step=1, limit=4
    $region2: #{tpu_custom_call.1} parent=1 // loop_pre_header
      _
    $region3: #{tpu_custom_call.1} parent=1 // loop_header
      %s14 = sphi 0, %s18
      %p15 = scmp.ge.s32.totalorder %s14, 4
      %s21 = sphi 0, %s33
      %s22 = sphi 0, %s29
      %s23 = sphi 0, %s21
      %s24 = sphi 0, %s22
      %s25 = sphi 0, %s23
      %s26 = sphi 0, %s24
      %s38 = sphi 0, %s40
      %s41 = sphi 0, %s38
      %s42 = sphi 0, %s41
      %s58 = sphi 0, %s42
      %s62 = sphi 0, %s62
      %s64 = sphi 0, %s62
      %s65 = sphi 0, %s64
      %s79 = sphi 0, %s65
      %s83 = sphi 0, %s83
      %s85 = sphi 0, %s83
      %s86 = sphi 0, %s85
      %s100 = sphi 0, %s86
      %s106 = sphi 0, %s108
      %s109 = sphi 0, %s106
      %s110 = sphi 0, %s109
      %s126 = sphi 0, %s110
    $region4: #{tpu_custom_call.1} parent=1 // loop_header_branch
      %17 = sbr.rel (%p15) target = $region8
    $region5: #{tpu_custom_call.1} parent=1 // loop_body
      %s19 = ssub.s32 %s14, 1
      %s20 = ssub.s32 %s14, 2
      %s27 = sadd.s32 1, %s22
      %p28 = scmp.ge.s32.totalorder %s27, 2
      %s29 = scalar_select %p28, 0, %s27
      %s30 = sadd.s32 1, %s21
      %s31 = scalar_select %p28, %s30, %s21
      %p32 = scmp.ge.s32.totalorder %s31, 1
      %s33 = scalar_select %p32, 0, %s31
      %s34 = ssub.s32 %s21, %s33
      %s35 = ssub.s32 %s22, %s29
      %s36 = sor.u32 %s34, %s35
      %p37 = scmp.eq.s32.totalorder %s36, 0
      %s39 = sadd.s32 %s38, 1
      %s40 = scalar_select %p37, %s38, %s39
      %p43 = pneg %p37
      %p44 = scmp.eq.s32.totalorder %s14, 1
      %p45 = por %p43, %p44
      %p46 = scmp.ne.s32.totalorder %s38, %s41
      %p47 = scmp.eq.s32.totalorder %s14, 0
      %p48 = por %p46, %p47
      %p49 = scmp.ne.s32.totalorder %s38, %s41
      %p50 = scmp.eq.s32.totalorder %s19, 1
      %p51 = por %p49, %p50
      %p52 = scmp.ne.s32.totalorder %s41, %s42
      %p53 = scmp.eq.s32.totalorder %s19, 0
      %p54 = por %p52, %p53
      %p55 = scmp.ne.s32.totalorder %s41, %s42
      %p56 = scmp.eq.s32.totalorder %s20, 1
      %p57 = por %p55, %p56
      %p59 = scmp.ne.s32.totalorder %s42, %s58
      %p60 = scmp.eq.s32.totalorder %s20, 0
      %p61 = por %p59, %p60
      %s63 = sadd.s32 %s62, 1
      %p66 = scmp.eq.s32.totalorder %s14, 1
      %p67 = scmp.ne.s32.totalorder %s62, %s64
      %p68 = scmp.eq.s32.totalorder %s14, 0
      %p69 = por %p67, %p68
      %p70 = scmp.ne.s32.totalorder %s62, %s64
      %p71 = scmp.eq.s32.totalorder %s19, 1
      %p72 = por %p70, %p71
      %p73 = scmp.ne.s32.totalorder %s64, %s65
      %p74 = scmp.eq.s32.totalorder %s19, 0
      %p75 = por %p73, %p74
      %p76 = scmp.ne.s32.totalorder %s64, %s65
      %p77 = scmp.eq.s32.totalorder %s20, 1
      %p78 = por %p76, %p77
      %p80 = scmp.ne.s32.totalorder %s65, %s79
      %p81 = scmp.eq.s32.totalorder %s20, 0
      %p82 = por %p80, %p81
      %s84 = sadd.s32 %s83, 1
      %p87 = scmp.eq.s32.totalorder %s14, 1
      %p88 = scmp.ne.s32.totalorder %s83, %s85
      %p89 = scmp.eq.s32.totalorder %s14, 0
      %p90 = por %p88, %p89
      %p91 = scmp.ne.s32.totalorder %s83, %s85
      %p92 = scmp.eq.s32.totalorder %s19, 1
      %p93 = por %p91, %p92
      %p94 = scmp.ne.s32.totalorder %s85, %s86
      %p95 = scmp.eq.s32.totalorder %s19, 0
      %p96 = por %p94, %p95
      %p97 = scmp.ne.s32.totalorder %s85, %s86
      %p98 = scmp.eq.s32.totalorder %s20, 1
      %p99 = por %p97, %p98
      %p101 = scmp.ne.s32.totalorder %s86, %s100
      %p102 = scmp.eq.s32.totalorder %s20, 0
      %p103 = por %p101, %p102
      %s104 = ssub.s32 %s21, %s33
      %p105 = scmp.eq.s32.totalorder %s104, 0
      %s107 = sadd.s32 %s106, 1
      %s108 = scalar_select %p105, %s106, %s107
      %p111 = pneg %p105
      %p112 = scmp.eq.s32.totalorder %s14, 1
      %p113 = por %p111, %p112
      %p114 = scmp.ne.s32.totalorder %s106, %s109
      %p115 = scmp.eq.s32.totalorder %s14, 0
      %p116 = por %p114, %p115
      %p117 = scmp.ne.s32.totalorder %s106, %s109
      %p118 = scmp.eq.s32.totalorder %s19, 1
      %p119 = por %p117, %p118
      %p120 = scmp.ne.s32.totalorder %s109, %s110
      %p121 = scmp.eq.s32.totalorder %s19, 0
      %p122 = por %p120, %p121
      %p123 = scmp.ne.s32.totalorder %s109, %s110
      %p124 = scmp.eq.s32.totalorder %s20, 1
      %p125 = por %p123, %p124
      %p127 = scmp.ne.s32.totalorder %s110, %s126
      %p128 = scmp.eq.s32.totalorder %s20, 0
      %p129 = por %p127, %p128
      %p130 = scmp.le.s32.totalorder 1, %s14
      %p131 = scmp.lt.s32.totalorder %s14, 3
      %p132 = pnand %p130, %p131
      %p133 = pneg %p132
      // Predicated region
      $region9: #{tpu_custom_call.1} parent=5 // pred_check
        _
      $region10: #{tpu_custom_call.1} parent=5 // pred_check_branch
        %135 = sbr.rel (%p132) target = $region12
      $region11: #{tpu_custom_call.1} parent=5 // pred_region
        %s136 = ssub.s32 %s14, 1
        // Predicated region
        $region13: #{tpu_custom_call.1} parent=11 // pred_check
          %p137 = pneg %p75
        $region14: #{tpu_custom_call.1} parent=11 // pred_check_branch
          %139 = sbr.rel (%p137) target = $region16
        $region15: #{tpu_custom_call.1} parent=11 // pred_region
          %141 = vsyncadd [#allocation7], 0
          %s143 = sshll.u32 %s1, 4
          %s144 = int_to_ptr.hbm [resolvable:$true] %s143
          %s145 = sshll.u32 [#allocation6], 4
          %s146 = int_to_ptr.vmem [resolvable:$true] %s145
          %148 = dma.hbm_to_vmem [thread:$0]  %s144, 32, %s146, [#allocation7]
        $region16: #{tpu_custom_call.1} parent=11 // pred_fallthru
          _
        // Predicated region
        $region17: #{tpu_custom_call.1} parent=11 // pred_check
          %p149 = pneg %p96
        $region18: #{tpu_custom_call.1} parent=11 // pred_check_branch
          %151 = sbr.rel (%p149) target = $region20
        $region19: #{tpu_custom_call.1} parent=11 // pred_region
          _
        $region20: #{tpu_custom_call.1} parent=11 // pred_fallthru
          _
      $region12: #{tpu_custom_call.1} parent=5 // pred_fallthru
        _
      %p152 = scmp.lt.s32.totalorder %s14, 2
      // Predicated region
      $region21: #{tpu_custom_call.1} parent=5 // pred_check
        %p153 = pneg %p152
      $region22: #{tpu_custom_call.1} parent=5 // pred_check_branch
        %155 = sbr.rel (%p153) target = $region24
      $region23: #{tpu_custom_call.1} parent=5 // pred_region
        // Predicated region
        $region25: #{tpu_custom_call.1} parent=23 // pred_check
          %p156 = pneg %p48
        $region26: #{tpu_custom_call.1} parent=23 // pred_check_branch
          %158 = sbr.rel (%p156) target = $region28
        $region27: #{tpu_custom_call.1} parent=23 // pred_region
          %s159 = sand.u32 %s38, 1
          %s160 = scalar_lea.sflag [#allocation4], %s159
          %s161 = sand.u32 %s38, 1
          %s162 = smul.addr %s161, 16
          %s163 = scalar_lea.vmem [#allocation3], %s162
          %s164 = smul.u32 2, %s21
          %166 = vsyncadd %s160, 0
          %s167 = smul.addr %s164, 2
          %s168 = sadd.s32 %s22, %s167
          %s169 = smul.addr %s168, 8
          %s170 = scalar_lea.hbm %s0, %s169
          %s171 = sshll.u32 %s170, 4
          %s172 = int_to_ptr.hbm [resolvable:$true] %s171
          %s173 = sshll.u32 %s163, 4
          %s174 = int_to_ptr.vmem [resolvable:$true] %s173
          %179 = dma.hbm_to_vmem [thread:$0]  %s172, 256, %s174, %s160, 256, 128, 8
        $region28: #{tpu_custom_call.1} parent=23 // pred_fallthru
          _
      $region24: #{tpu_custom_call.1} parent=5 // pred_fallthru
        _
      %p180 = scmp.le.s32.totalorder 1, %s14
      %p181 = scmp.lt.s32.totalorder %s14, 3
      %p182 = pnand %p180, %p181
      %p183 = pneg %p182
      // Predicated region
      $region29: #{tpu_custom_call.1} parent=5 // pred_check
        _
      $region30: #{tpu_custom_call.1} parent=5 // pred_check_branch
        %185 = sbr.rel (%p182) target = $region32
      $region31: #{tpu_custom_call.1} parent=5 // pred_region
        %s186 = ssub.s32 %s14, 1
        %s187 = sand.u32 %s41, 1
        %s188 = scalar_lea.sflag [#allocation4], %s187
        %s189 = sand.u32 %s41, 1
        %s190 = smul.addr %s189, 16
        %s191 = scalar_lea.vmem [#allocation3], %s190
        // Predicated region
        $region33: #{tpu_custom_call.1} parent=31 // pred_check
          %p192 = pneg %p54
        $region34: #{tpu_custom_call.1} parent=31 // pred_check_branch
          %194 = sbr.rel (%p192) target = $region36
        $region35: #{tpu_custom_call.1} parent=31 // pred_region
          %196 = dma.done %s188, 256
        $region36: #{tpu_custom_call.1} parent=31 // pred_fallthru
          _
        // Predicated region
        $region37: #{tpu_custom_call.1} parent=31 // pred_check
          %p197 = pneg %p75
        $region38: #{tpu_custom_call.1} parent=31 // pred_check_branch
          %199 = sbr.rel (%p197) target = $region40
        $region39: #{tpu_custom_call.1} parent=31 // pred_region
          %201 = dma.done [#allocation7], 32
        $region40: #{tpu_custom_call.1} parent=31 // pred_fallthru
          _
        %s202 = sand.u32 %s41, 1
        %s203 = scalar_lea.sflag [#allocation4], %s202
        %s204 = sand.u32 %s41, 1
        %s205 = smul.addr %s204, 16
        %s206 = scalar_lea.vmem [#allocation3], %s205
        %p207 = pneg %p54
        %p208 = pneg %p51
        %p209 = pneg %p75
        %p210 = pneg %p72
        %p211 = pneg %p96
        %p212 = pneg %p93
        %p213 = pneg %p122
        %p214 = pneg %p119
        %s215 = smul.u32 2, %s23
        %p216 = scmp.eq.s32.totalorder %s24, 0
        // Predicated region
        $region41: #{tpu_custom_call.1} parent=31 // pred_check
          %p217 = pneg %p216
        $region42: #{tpu_custom_call.1} parent=31 // pred_check_branch
          %219 = sbr.rel (%p217) target = $region44
        $region43: #{tpu_custom_call.1} parent=31 // pred_region
          %vm220 = vcmask 254976
          %221 = vst.msk [vmem:[#allocation2] sm:$0x3] %vm220, 0.0
        $region44: #{tpu_custom_call.1} parent=31 // pred_fallthru
          _
        %v222 = vld [vmem:[%s191] sm:$0xff]
        %v223 = vld [vmem:[%s191 + $0x8] sm:$0xff]
        %v224 = vld [vmem:[#allocation2] sm:$0x3]
        %vm225 = vcmask 261120
        %v226 = vsel %vm225, %v222, 0.0
        %v227 = vrot.slane %v226, 4
        %v228 = vadd.f32 %v226, %v227
        %v229 = vrot.slane %v228, 2
        %v230 = vadd.f32 %v228, %v229
        %v231 = vrot.slane %v230, 1
        %v232 = vadd.f32 %v230, %v231
        %v233 = vsel %vm225, %v223, 0.0
        %v234 = vrot.slane %v233, 4
        %v235 = vadd.f32 %v233, %v234
        %v236 = vrot.slane %v235, 2
        %v237 = vadd.f32 %v235, %v236
        %v238 = vrot.slane %v237, 1
        %v239 = vadd.f32 %v237, %v238
        %vm242 = vcmask 1041409
        %v243 = vsel %vm242, %v239, %v232
        %v245 = vadd.f32 %v224, %v243
        %vm246 = vcmask 254976
        %247 = vst.msk [vmem:[#allocation2] sm:$0x3] %vm246, %v245
        %p248 = scmp.eq.s32.totalorder %s24, 1
        // Predicated region
        $region45: #{tpu_custom_call.1} parent=31 // pred_check
          %p249 = pneg %p248
        $region46: #{tpu_custom_call.1} parent=31 // pred_check_branch
          %251 = sbr.rel (%p249) target = $region48
        $region47: #{tpu_custom_call.1} parent=31 // pred_region
          %v252 = vld [vmem:[#allocation2] sm:$0x3]
          %v253 = vmul.f32 %v252, 0.0625
          %v254 = vld [vmem:[#allocation6] sm:$0x3]
          %v255 = vld [vmem:[%s2] sm:$0x1]
          %v257 = vperm.slane %v255, 0
          %v260 = vsel %vm225, %v253, 0
          %v263 = vsel %vm225, %v254, 0
          %265 = vmatpush.xpose.msra.mxu0 0.0
          %266 = vmatpush.xpose.msra.mxu0 0.0
          %267 = vmatpush.xpose.msra.mxu0 0.0
          %268 = vmatpush.xpose.msra.mxu0 0.0
          %269 = vmatpush.xpose.msra.mxu0 0.0
          %270 = vmatpush.xpose.msra.mxu0 0.0
          %271 = vmatpush.xpose.msra.mxu0 0.0
          %272 = vmatpush.xpose.msra.mxu0 0.0
          %273 = vmatpush.xpose.msra.mxu0 0.0
          %274 = vmatpush.xpose.msra.mxu0 0.0
          %275 = vmatpush.xpose.msra.mxu0 0.0
          %276 = vmatpush.xpose.msra.mxu0 0.0
          %277 = vmatpush.xpose.msra.mxu0 0.0
          %278 = vmatpush.xpose.msra.mxu0 0.0
          %279 = vmatpush.xpose.msra.mxu0 0.0
          %280 = vmatpush.xpose.msra.mxu0 %v263
          %281 = vmatmul.f32.gmra.mxu0 %v260
          %v282 = vpop.f32.mrf.mxu0
          %v283 = vadd.f32 %v257, %v282
          %284 = vdwg.mxu0
          %v285 = vmax.f32 %v283, 0.0
          %vm286 = vcmask 9216
          %287 = vst.msk [vmem:[#allocation8] sm:$0x3] %vm286, %v285
        $region48: #{tpu_custom_call.1} parent=31 // pred_fallthru
          _
        // Predicated region
        $region49: #{tpu_custom_call.1} parent=31 // pred_check
          %p288 = pneg %p119
        $region50: #{tpu_custom_call.1} parent=31 // pred_check_branch
          %290 = sbr.rel (%p288) target = $region52
        $region51: #{tpu_custom_call.1} parent=31 // pred_region
          %292 = vsyncadd [#allocation5], 0
          %s293 = smul.addr %s23, 2
          %s294 = scalar_lea.hbm %s3, %s293
          %s296 = sshll.u32 [#allocation8], 4
          %s297 = int_to_ptr.vmem [resolvable:$true] %s296
          %s298 = sshll.u32 %s294, 4
          %s299 = int_to_ptr.hbm [resolvable:$true] %s298
          %301 = dma.vmem_to_hbm [thread:$0]  %s297, 32, %s299, [#allocation5]
        $region52: #{tpu_custom_call.1} parent=31 // pred_fallthru
          _
        // Predicated region
        $region53: #{tpu_custom_call.1} parent=31 // pred_check
          %p302 = pneg %p119
        $region54: #{tpu_custom_call.1} parent=31 // pred_check_branch
          %304 = sbr.rel (%p302) target = $region56
        $region55: #{tpu_custom_call.1} parent=31 // pred_region
          %306 = dma.done [#allocation5], 32
        $region56: #{tpu_custom_call.1} parent=31 // pred_fallthru
          _
      $region32: #{tpu_custom_call.1} parent=5 // pred_fallthru
        _
      %p307 = scmp.le.s32.totalorder 2, %s14
      // Predicated region
      $region57: #{tpu_custom_call.1} parent=5 // pred_check
        %p308 = pneg %p307
      $region58: #{tpu_custom_call.1} parent=5 // pred_check_branch
        %310 = sbr.rel (%p308) target = $region60
      $region59: #{tpu_custom_call.1} parent=5 // pred_region
        %s311 = ssub.s32 %s14, 2
      $region60: #{tpu_custom_call.1} parent=5 // pred_fallthru
        _
    $region6: #{tpu_custom_call.1} parent=1 // loop_footer
      %s18 = sadd.s32 1, %s14
    $region7: #{tpu_custom_call.1} parent=1 // loop_footer_branch
      %13 = sbr.rel target = $region3
    $region8: #{tpu_custom_call.1} parent=1 // loop_exit
      _
    %312 = vsyncpa [#allocation4], 1
    %s313 = scalar_lea.sflag [#allocation4], 1
    %314 = vsyncpa %s313, 1
    %315 = vsyncpa [#allocation7], 1
    %316 = vsyncpa [#allocation5], 1
    %s317 = scalar_lea.sflag [#allocation5], 1
    %318 = vsyncpa %s317, 1

</llo_original>
